<compile_context>
chip_gen: v7x
topology: tpu7x:2x2x1
jax: 0.10.0
libtpu: 0.0.40
codegen_flags: <defaults>
</compile_context>

<pallas_src>
import jax
import jax.numpy as jnp
from jax import lax
from jax.experimental import pallas as pl
from jax.experimental.pallas import tpu as pltpu


def _fused_last_token_xent_kernel(h_ref, w_ref, b_ref, tgt_ref, loss_ref,
                                  m_sc, s_sc, c_sc):
    """Per vocab tile j: logits = h @ W[:, tile j] + b[tile j]; online logsumexp
    + correct-class gather; finalize mean loss on the last tile."""
    j = pl.program_id(0)
    nv = pl.num_programs(0)

    @pl.when(j == 0)
    def _():
        m_sc[...] = jnp.full_like(m_sc, -jnp.inf)
        s_sc[...] = jnp.zeros_like(s_sc)
        c_sc[...] = jnp.zeros_like(c_sc)

    # MXU: bf16 operands, f32 accumulation; bias added once per (B, tv) tile.
    logits = jnp.dot(h_ref[...], w_ref[...],
                     preferred_element_type=jnp.float32) + b_ref[...]   # (B, tv) f32

    # Online (streaming) logsumexp over vocab tiles.
    m_new = jnp.maximum(m_sc[...], jnp.max(logits, axis=-1, keepdims=True))   # (B, 1)
    alpha = jnp.exp(m_sc[...] - m_new)
    s_sc[...] = alpha * s_sc[...] + jnp.sum(jnp.exp(logits - m_new),
                                            axis=-1, keepdims=True)
    m_sc[...] = m_new

    # Gather the correct-class logit within this vocab tile via a lane-index mask.
    tv = logits.shape[-1]
    col = lax.broadcasted_iota(jnp.int32, logits.shape, 1) + j * tv     # global class ids
    hit = col == tgt_ref[...]                                           # (B, tv)
    c_sc[...] += jnp.sum(jnp.where(hit, logits, 0.0), axis=-1, keepdims=True)

    @pl.when(j == nv - 1)
    def _():
        lse = m_sc[...] + jnp.log(s_sc[...])                            # (B, 1)
        loss_ref[0, 0] = jnp.mean(lse - c_sc[...])                      # mean reduction


def fused_last_token_cross_entropy(h_pad_bf16, w_pad_bf16, b, targets, *, tv=128):
    """loss = cross_entropy(h_pad @ W_pad + b, targets); logits never leave VMEM."""
    B, Dp = h_pad_bf16.shape
    V = w_pad_bf16.shape[1]
    assert V % tv == 0 and tv % 128 == 0 and Dp % 128 == 0
    nv = V // tv
    tgt2d = targets.reshape(B, 1).astype(jnp.int32)

    loss = pl.pallas_call(
        _fused_last_token_xent_kernel,
        out_shape=jax.ShapeDtypeStruct((1, 1), jnp.float32),
        grid=(nv,),
        in_specs=[
            pl.BlockSpec((B, Dp), lambda j: (0, 0)),        # h_last   (resident)
            pl.BlockSpec((Dp, tv), lambda j: (0, j)),       # W vocab tile (streamed)
            pl.BlockSpec((1, tv), lambda j: (0, j)),        # bias vocab tile
            pl.BlockSpec((B, 1), lambda j: (0, 0)),         # targets  (resident)
        ],
        out_specs=pl.BlockSpec(memory_space=pltpu.MemorySpace.SMEM),
        scratch_shapes=[
            pltpu.VMEM((B, 1), jnp.float32),    # running max
            pltpu.VMEM((B, 1), jnp.float32),    # running sum(exp)
            pltpu.VMEM((B, 1), jnp.float32),    # correct-class logit
        ],
        compiler_params=pltpu.CompilerParams(
            # The vocab axis is an online reduction -> "arbitrary".
            # TODO(synk): for large B, add a "parallel" row-tile axis (per-example
            # losses) so v7x's two TensorCores both get work.
            dimension_semantics=("arbitrary",),
            # Fits the default scoped VMEM on v5e / v6e / v7x alike.
            vmem_limit_bytes=32 * 1024 * 1024,
        ),
    )(h_pad_bf16, w_pad_bf16, b, tgt2d)
    return loss[0, 0]


def auto_regressive_wrapper_forward(x_ids, target, params):
    """Mirrors AutoRegressiveWrapper.forward(x, target) -> (loss, out2)."""
    embed, W, b = params["embed"], params["W"], params["b"]
    B, S = x_ids.shape
    D = embed.shape[1]

    # Inner "net": hidden states are out2 and must be materialized anyway, so the
    # token-embedding gather stays a plain XLA gather (no extra HBM round trip).
    hidden = embed[x_ids]                    # (B, S, D) f32
    out2 = hidden

    # The wrapper only consumes out[:, -1, :]: compute last-token logits only,
    # fused with the cross-entropy so the logits stay in VMEM.
    h_last = hidden[:, -1, :]                # (B, D)

    # Pad the contraction dim to the MXU-native 128 and cast MXU operands to
    # bf16 (accumulation stays f32 inside the kernel; zero padding is exact).
    Dp = ((D + 127) // 128) * 128
    h_pad = jnp.pad(h_last, ((0, 0), (0, Dp - D))).astype(jnp.bfloat16)
    w_pad = jnp.pad(W, ((0, Dp - D), (0, 0))).astype(jnp.bfloat16)

    targets_reorg = target.reshape(-1)       # (B,)
    loss = fused_last_token_cross_entropy(h_pad, w_pad, b, targets_reorg, tv=128)
    return loss, out2


if __name__ == "__main__":
    B, S, D, V = 2, 8, 32, 512   # batch, sequence_len, hidden, vocab

    key = jax.random.PRNGKey(0)
    k1, k2, k3, k4 = jax.random.split(key, 4)

    params = {
        "embed": jax.random.normal(k1, (V, D), dtype=jnp.float32) * 0.02,
        "W": jax.random.normal(k2, (D, V), dtype=jnp.float32) * 0.02,
        "b": jnp.zeros((1, V), dtype=jnp.float32),
    }

    x = jax.random.randint(k3, (B, S), 0, V, dtype=jnp.int32)
    target = jax.random.randint(k4, (B,), 0, V, dtype=jnp.int32)

    loss, out2 = auto_regressive_wrapper_forward(x, target, params)
    jax.block_until_ready((loss, out2))

    # Pure-JAX f32 reference (kernel uses bf16 MXU operands -> small tolerance).
    hidden_ref = params["embed"][x]
    last_ref = hidden_ref[:, -1, :] @ params["W"] + params["b"]          # (B, V)
    lse_ref = jax.scipy.special.logsumexp(last_ref, axis=-1)
    loss_ref = jnp.mean(lse_ref - last_ref[jnp.arange(B), target])
    assert jnp.allclose(loss, loss_ref, atol=1e-3, rtol=1e-3), (loss, loss_ref)
    assert out2.shape == (B, S, D)
    assert jnp.array_equal(out2, hidden_ref)

    print("KERNEL_OK")
</pallas_src>

<mosaic_0001>
module attributes {stable_mosaic.version = 11 : i64} {
  func.func @_fused_last_token_xent_kernel(%arg0: i32, %arg1: memref<2x128xbf16, #tpu.memory_space<vmem>>, %arg2: memref<128x128xbf16, #tpu.memory_space<vmem>>, %arg3: memref<1x128xf32, #tpu.memory_space<vmem>>, %arg4: memref<2x1xi32, #tpu.memory_space<vmem>>, %arg5: memref<1x1xf32, #tpu.memory_space<smem>>, %arg6: memref<2x1xf32, #tpu.memory_space<vmem>>, %arg7: memref<2x1xf32, #tpu.memory_space<vmem>>, %arg8: memref<2x1xf32, #tpu.memory_space<vmem>>) attributes {dimension_semantics = [#tpu.dimension_semantics<arbitrary>], iteration_bounds = array<i64: 4>, scalar_prefetch = 0 : i64, scratch_operands = 3 : i64, tpu.core_type = #tpu.core_type<tc>, window_params = [{pipeline_mode = #tpu.pipeline_mode<synchronous>, transform_indices = @transform_0, window_bounds = array<i64: 2, 128>}, {transform_indices = @transform_1, window_bounds = array<i64: 128, 128>}, {transform_indices = @transform_2, window_bounds = array<i64: 1, 128>}, {pipeline_mode = #tpu.pipeline_mode<synchronous>, transform_indices = @transform_3, window_bounds = array<i64: 2, 1>}, {transform_indices = @transform_4, window_bounds = array<i64: 1, 1>}]} {
    %c0_i32 = arith.constant 0 : i32
    %0 = arith.cmpi eq, %arg0, %c0_i32 : i32
    %1 = arith.extui %0 : i1 to i32
    %c0_i32_0 = arith.constant 0 : i32
    %2 = arith.cmpi ne, %1, %c0_i32_0 : i32
    scf.if %2 {
      %cst_27 = arith.constant 0xFF800000 : f32
      %43 = vector.broadcast %cst_27 : f32 to vector<2x1xf32>
      %c0_28 = arith.constant 0 : index
      %c0_29 = arith.constant 0 : index
      %44 = vector.load %arg6[%c0_28, %c0_29] : memref<2x1xf32, #tpu.memory_space<vmem>>, vector<2x1xf32>
      tpu.vector_store %arg6[%c0_28, %c0_29], %43 {strides = array<i32>} : memref<2x1xf32, #tpu.memory_space<vmem>>, vector<2x1xf32>,
      %cst_30 = arith.constant 0.000000e+00 : f32
      %45 = vector.broadcast %cst_30 : f32 to vector<2x1xf32>
      %c0_31 = arith.constant 0 : index
      %c0_32 = arith.constant 0 : index
      %46 = vector.load %arg7[%c0_31, %c0_32] : memref<2x1xf32, #tpu.memory_space<vmem>>, vector<2x1xf32>
      tpu.vector_store %arg7[%c0_31, %c0_32], %45 {strides = array<i32>} : memref<2x1xf32, #tpu.memory_space<vmem>>, vector<2x1xf32>,
      %cst_33 = arith.constant 0.000000e+00 : f32
      %47 = vector.broadcast %cst_33 : f32 to vector<2x1xf32>
      %c0_34 = arith.constant 0 : index
      %c0_35 = arith.constant 0 : index
      %48 = vector.load %arg8[%c0_34, %c0_35] : memref<2x1xf32, #tpu.memory_space<vmem>>, vector<2x1xf32>
      tpu.vector_store %arg8[%c0_34, %c0_35], %47 {strides = array<i32>} : memref<2x1xf32, #tpu.memory_space<vmem>>, vector<2x1xf32>,
    } else {
    }
    %c0 = arith.constant 0 : index
    %c0_1 = arith.constant 0 : index
    %3 = vector.load %arg1[%c0, %c0_1] : memref<2x128xbf16, #tpu.memory_space<vmem>>, vector<2x128xbf16>
    %c0_2 = arith.constant 0 : index
    %c0_3 = arith.constant 0 : index
    %4 = vector.load %arg2[%c0_2, %c0_3] : memref<128x128xbf16, #tpu.memory_space<vmem>>, vector<128x128xbf16>
    %cst = arith.constant dense<0.000000e+00> : vector<2x128xf32>
    %5 = tpu.matmul %3, %4, %cst {dimension_numbers = #tpu.dot_dimension_numbers<[1], [0], [0], [1], [0, 0, 1, 1], [], []>} : vector<2x128xbf16>, vector<128x128xbf16>, vector<2x128xf32> -> vector<2x128xf32>
    %c0_4 = arith.constant 0 : index
    %c0_5 = arith.constant 0 : index
    %6 = vector.load %arg3[%c0_4, %c0_5] : memref<1x128xf32, #tpu.memory_space<vmem>>, vector<1x128xf32>
    %7 = vector.broadcast %6 : vector<1x128xf32> to vector<2x128xf32>
    %8 = arith.addf %5, %7 : vector<2x128xf32>
    %c0_6 = arith.constant 0 : index
    %c0_7 = arith.constant 0 : index
    %9 = vector.load %arg6[%c0_6, %c0_7] : memref<2x1xf32, #tpu.memory_space<vmem>>, vector<2x1xf32>
    %cst_8 = arith.constant dense<0xFF800000> : vector<2xf32>
    %10 = vector.multi_reduction <maximumf>, %8, %cst_8 [1] : vector<2x128xf32> to vector<2xf32>
    %11 = vector.shape_cast %10 : vector<2xf32> to vector<2x1xf32>
    %12 = arith.maximumf %9, %11 : vector<2x1xf32>
    %c0_9 = arith.constant 0 : index
    %c0_10 = arith.constant 0 : index
    %13 = vector.load %arg6[%c0_9, %c0_10] : memref<2x1xf32, #tpu.memory_space<vmem>>, vector<2x1xf32>
    %14 = arith.subf %13, %12 : vector<2x1xf32>
    %15 = math.exp %14 : vector<2x1xf32>
    %c0_11 = arith.constant 0 : index
    %c0_12 = arith.constant 0 : index
    %16 = vector.load %arg7[%c0_11, %c0_12] : memref<2x1xf32, #tpu.memory_space<vmem>>, vector<2x1xf32>
    %17 = arith.mulf %15, %16 : vector<2x1xf32>
    %18 = vector.broadcast %12 : vector<2x1xf32> to vector<2x128xf32>
    %19 = arith.subf %8, %18 : vector<2x128xf32>
    %20 = math.exp %19 : vector<2x128xf32>
    %cst_13 = arith.constant dense<0.000000e+00> : vector<2xf32>
    %21 = vector.multi_reduction <add>, %20, %cst_13 [1] : vector<2x128xf32> to vector<2xf32>
    %22 = vector.shape_cast %21 : vector<2xf32> to vector<2x1xf32>
    %23 = arith.addf %17, %22 : vector<2x1xf32>
    %c0_14 = arith.constant 0 : index
    %c0_15 = arith.constant 0 : index
    %24 = vector.load %arg7[%c0_14, %c0_15] : memref<2x1xf32, #tpu.memory_space<vmem>>, vector<2x1xf32>
    tpu.vector_store %arg7[%c0_14, %c0_15], %23 {strides = array<i32>} : memref<2x1xf32, #tpu.memory_space<vmem>>, vector<2x1xf32>,
    %c0_16 = arith.constant 0 : index
    %c0_17 = arith.constant 0 : index
    %25 = vector.load %arg6[%c0_16, %c0_17] : memref<2x1xf32, #tpu.memory_space<vmem>>, vector<2x1xf32>
    tpu.vector_store %arg6[%c0_16, %c0_17], %12 {strides = array<i32>} : memref<2x1xf32, #tpu.memory_space<vmem>>, vector<2x1xf32>,
    %26 = tpu.iota {dimensions = array<i32: 1>} : vector<2x128xi32>
    %c128_i32 = arith.constant 128 : i32
    %27 = arith.muli %arg0, %c128_i32 : i32
    %28 = vector.broadcast %27 : i32 to vector<2x128xi32>
    %29 = arith.addi %26, %28 : vector<2x128xi32>
    %c0_18 = arith.constant 0 : index
    %c0_19 = arith.constant 0 : index
    %30 = vector.load %arg4[%c0_18, %c0_19] : memref<2x1xi32, #tpu.memory_space<vmem>>, vector<2x1xi32>
    %31 = vector.broadcast %30 : vector<2x1xi32> to vector<2x128xi32>
    %32 = arith.cmpi eq, %29, %31 : vector<2x128xi32>
    %c0_20 = arith.constant 0 : index
    %c0_21 = arith.constant 0 : index
    %33 = vector.load %arg8[%c0_20, %c0_21] : memref<2x1xf32, #tpu.memory_space<vmem>>, vector<2x1xf32>
    %cst_22 = arith.constant 0.000000e+00 : f32
    %34 = vector.broadcast %cst_22 : f32 to vector<2x128xf32>
    %35 = arith.select %32, %8, %34 : vector<2x128xi1>, vector<2x128xf32>
    %cst_23 = arith.constant dense<0.000000e+00> : vector<2xf32>
    %36 = vector.multi_reduction <add>, %35, %cst_23 [1] : vector<2x128xf32> to vector<2xf32>
    %37 = vector.shape_cast %36 : vector<2xf32> to vector<2x1xf32>
    %38 = arith.addf %33, %37 : vector<2x1xf32>
    %c0_24 = arith.constant 0 : index
    %c0_25 = arith.constant 0 : index
    %39 = vector.load %arg8[%c0_24, %c0_25] : memref<2x1xf32, #tpu.memory_space<vmem>>, vector<2x1xf32>
    tpu.vector_store %arg8[%c0_24, %c0_25], %38 {strides = array<i32>} : memref<2x1xf32, #tpu.memory_space<vmem>>, vector<2x1xf32>,
    %c3_i32 = arith.constant 3 : i32
    %40 = arith.cmpi eq, %arg0, %c3_i32 : i32
    %41 = arith.extui %40 : i1 to i32
    %c0_i32_26 = arith.constant 0 : i32
    %42 = arith.cmpi ne, %41, %c0_i32_26 : i32
    scf.if %42 {
      %c0_27 = arith.constant 0 : index
      %c0_28 = arith.constant 0 : index
      %43 = vector.load %arg6[%c0_27, %c0_28] : memref<2x1xf32, #tpu.memory_space<vmem>>, vector<2x1xf32>
      %c0_29 = arith.constant 0 : index
      %c0_30 = arith.constant 0 : index
      %44 = vector.load %arg7[%c0_29, %c0_30] : memref<2x1xf32, #tpu.memory_space<vmem>>, vector<2x1xf32>
      %45 = math.log %44 : vector<2x1xf32>
      %46 = arith.addf %43, %45 : vector<2x1xf32>
      %c0_31 = arith.constant 0 : index
      %c0_32 = arith.constant 0 : index
      %47 = vector.load %arg8[%c0_31, %c0_32] : memref<2x1xf32, #tpu.memory_space<vmem>>, vector<2x1xf32>
      %48 = arith.subf %46, %47 : vector<2x1xf32>
      %49 = vector.shape_cast %48 : vector<2x1xf32> to vector<1x2x1xf32>
      %cst_33 = arith.constant dense<0.000000e+00> : vector<1xf32>
      %50 = vector.multi_reduction <add>, %49, %cst_33 [1, 2] : vector<1x2x1xf32> to vector<1xf32>
      %51 = vector.shape_cast %50 : vector<1xf32> to vector<1x1x1xf32>
      %52 = vector.extract %51[0, 0, 0] : f32 from vector<1x1x1xf32>
      %cst_34 = arith.constant 2.000000e+00 : f32
      %53 = arith.divf %52, %cst_34 : f32
      %c0_35 = arith.constant 0 : index
      %c0_36 = arith.constant 0 : index
      %54 = memref.load %arg5[%c0_35, %c0_36] : memref<1x1xf32, #tpu.memory_space<smem>>
      memref.store %53, %arg5[%c0_35, %c0_36] : memref<1x1xf32, #tpu.memory_space<smem>>
    } else {
    }
    return
  }
  func.func @transform_0(%arg0: i32) -> (i32, i32) {
    %c0_i32 = arith.constant 0 : i32
    %c0_i32_0 = arith.constant 0 : i32
    %c0_i32_1 = arith.constant 0 : i32
    return %c0_i32, %c0_i32_0 : i32, i32
  }
  func.func @transform_1(%arg0: i32) -> (i32, i32) {
    %c0_i32 = arith.constant 0 : i32
    %c0_i32_0 = arith.constant 0 : i32
    return %c0_i32, %arg0 : i32, i32
  }
  func.func @transform_2(%arg0: i32) -> (i32, i32) {
    %c0_i32 = arith.constant 0 : i32
    %c0_i32_0 = arith.constant 0 : i32
    return %c0_i32, %arg0 : i32, i32
  }
  func.func @transform_3(%arg0: i32) -> (i32, i32) {
    %c0_i32 = arith.constant 0 : i32
    %c0_i32_0 = arith.constant 0 : i32
    %c0_i32_1 = arith.constant 0 : i32
    return %c0_i32, %c0_i32_0 : i32, i32
  }
  func.func @transform_4(%arg0: i32) -> (i32, i32) {
    %c0_i32 = arith.constant 0 : i32
    %c0_i32_0 = arith.constant 0 : i32
    %c0_i32_1 = arith.constant 0 : i32
    return %c0_i32, %c0_i32_0 : i32, i32
  }
}

</mosaic_0001>

<llo_original>
// kernel: tpu_custom_call.1
$region0: #{tpu_custom_call.1}
  #allocation0 [shape = 'u32[]', space=smem, size = 0x4, offset = 0x4, fixed_abs, tag = 'smem constant byte address 0x4 - core index']
  #allocation1 [shape = 'u32[144,128]{1,0:T(1,128)}', space=vmem, size = 0x12000, scoped, tag = 'internal scratch']
  #allocation2 [shape = 'f32[2,1]{1,0:T(2,128)}', space=vmem, size = 0x400, scoped, tag = 'scratch operand']
  #allocation3 [shape = 'f32[2,1]{1,0:T(2,128)}', space=vmem, size = 0x400, scoped, tag = 'scratch operand']
  #allocation4 [shape = 'f32[2,1]{1,0:T(2,128)}', space=vmem, size = 0x400, scoped, tag = 'scratch operand']
  %s0 = inlined_call_operand.vmem [shape: bf16[2,128], index: 0, kind: input, shape index: {}]
  %s1 = inlined_call_operand.hbm [shape: bf16[128,512], index: 1, kind: input, shape index: {}]
  %s2 = inlined_call_operand.vmem [shape: f32[1,512], index: 2, kind: input, shape index: {}]
  %s3 = inlined_call_operand.vmem [shape: s32[2,1], index: 3, kind: input, shape index: {}]
  %s4 = inlined_call_operand.hbm [shape: f32[1,1], index: 4, kind: output, shape index: {}]
  %s5 = sld [smem:[#allocation0]]
  $region61: #{tpu_custom_call.1} parent=0
    _
  %s7 = ssub.s32 1, %s5
  %s8 = scalar_select 0, %s7, %s5
  $region1: #{tpu_custom_call.1} parent=0
    #allocation5 [shape = 'u8[65536]{0}', space=vmem, size = 0x10000, scoped, tag = 'input window, operand 1']
    #allocation6 [shape = 's32[2]{0}', space=sflag, size = 0x8, scoped, tag = 'scoped memory for tpu_custom_call.1']
    #allocation7 [shape = 's32[2]{0}', space=sflag, size = 0x8, scoped, tag = 'scoped memory for tpu_custom_call.1']
    #allocation8 [shape = 'u8[512]{0}', space=smem, size = 0x200, scoped, tag = 'output window, operand 0, single buffered']
    %9 = vsyncpa [#allocation6], 0
    %s10 = scalar_lea.sflag [#allocation6], 1
    %11 = vsyncpa %s10, 0
    %12 = vsyncpa [#allocation7], 0
    loop: start=0, step=1, limit=6
    $region2: #{tpu_custom_call.1} parent=1 // loop_pre_header
      _
    $region3: #{tpu_custom_call.1} parent=1 // loop_header
      %s14 = sphi 0, %s18
      %p15 = scmp.ge.s32.totalorder %s14, 6
      %s22 = sphi 0, %s22
      %s24 = sphi 0, %s22
      %s25 = sphi 0, %s24
      %s39 = sphi 0, %s25
      %s45 = sphi 0, %s47
      %s48 = sphi 0, %s45
      %s49 = sphi 0, %s48
      %s65 = sphi 0, %s49
      %s71 = sphi 0, %s73
      %s74 = sphi 0, %s71
      %s75 = sphi 0, %s74
      %s91 = sphi 0, %s75
      %s95 = sphi 0, %s95
      %s97 = sphi 0, %s95
      %s98 = sphi 0, %s97
      %s112 = sphi 0, %s98
      %s116 = sphi 0, %s116
      %s118 = sphi 0, %s116
      %s119 = sphi 0, %s118
      %s133 = sphi 0, %s119
    $region4: #{tpu_custom_call.1} parent=1 // loop_header_branch
      %17 = sbr.rel (%p15) target = $region8
    $region5: #{tpu_custom_call.1} parent=1 // loop_body
      %s19 = ssub.s32 %s14, 1
      %s20 = ssub.s32 %s14, 2
      %s21 = sadd.s32 %s14, 1
      %s23 = sadd.s32 %s22, 1
      %p26 = scmp.eq.s32.totalorder %s14, 3
      %p27 = scmp.ne.s32.totalorder %s22, %s24
      %p28 = scmp.eq.s32.totalorder %s14, 0
      %p29 = por %p27, %p28
      %p30 = scmp.ne.s32.totalorder %s22, %s24
      %p31 = scmp.eq.s32.totalorder %s19, 3
      %p32 = por %p30, %p31
      %p33 = scmp.ne.s32.totalorder %s24, %s25
      %p34 = scmp.eq.s32.totalorder %s19, 0
      %p35 = por %p33, %p34
      %p36 = scmp.ne.s32.totalorder %s24, %s25
      %p37 = scmp.eq.s32.totalorder %s20, 3
      %p38 = por %p36, %p37
      %p40 = scmp.ne.s32.totalorder %s25, %s39
      %p41 = scmp.eq.s32.totalorder %s20, 0
      %p42 = por %p40, %p41
      %s43 = ssub.s32 %s14, %s21
      %p44 = scmp.eq.s32.totalorder %s43, 0
      %s46 = sadd.s32 %s45, 1
      %s47 = scalar_select %p44, %s45, %s46
      %p50 = pneg %p44
      %p51 = scmp.eq.s32.totalorder %s14, 3
      %p52 = por %p50, %p51
      %p53 = scmp.ne.s32.totalorder %s45, %s48
      %p54 = scmp.eq.s32.totalorder %s14, 0
      %p55 = por %p53, %p54
      %p56 = scmp.ne.s32.totalorder %s45, %s48
      %p57 = scmp.eq.s32.totalorder %s19, 3
      %p58 = por %p56, %p57
      %p59 = scmp.ne.s32.totalorder %s48, %s49
      %p60 = scmp.eq.s32.totalorder %s19, 0
      %p61 = por %p59, %p60
      %p62 = scmp.ne.s32.totalorder %s48, %s49
      %p63 = scmp.eq.s32.totalorder %s20, 3
      %p64 = por %p62, %p63
      %p66 = scmp.ne.s32.totalorder %s49, %s65
      %p67 = scmp.eq.s32.totalorder %s20, 0
      %p68 = por %p66, %p67
      %s69 = ssub.s32 %s14, %s21
      %p70 = scmp.eq.s32.totalorder %s69, 0
      %s72 = sadd.s32 %s71, 1
      %s73 = scalar_select %p70, %s71, %s72
      %p76 = pneg %p70
      %p77 = scmp.eq.s32.totalorder %s14, 3
      %p78 = por %p76, %p77
      %p79 = scmp.ne.s32.totalorder %s71, %s74
      %p80 = scmp.eq.s32.totalorder %s14, 0
      %p81 = por %p79, %p80
      %p82 = scmp.ne.s32.totalorder %s71, %s74
      %p83 = scmp.eq.s32.totalorder %s19, 3
      %p84 = por %p82, %p83
      %p85 = scmp.ne.s32.totalorder %s74, %s75
      %p86 = scmp.eq.s32.totalorder %s19, 0
      %p87 = por %p85, %p86
      %p88 = scmp.ne.s32.totalorder %s74, %s75
      %p89 = scmp.eq.s32.totalorder %s20, 3
      %p90 = por %p88, %p89
      %p92 = scmp.ne.s32.totalorder %s75, %s91
      %p93 = scmp.eq.s32.totalorder %s20, 0
      %p94 = por %p92, %p93
      %s96 = sadd.s32 %s95, 1
      %p99 = scmp.eq.s32.totalorder %s14, 3
      %p100 = scmp.ne.s32.totalorder %s95, %s97
      %p101 = scmp.eq.s32.totalorder %s14, 0
      %p102 = por %p100, %p101
      %p103 = scmp.ne.s32.totalorder %s95, %s97
      %p104 = scmp.eq.s32.totalorder %s19, 3
      %p105 = por %p103, %p104
      %p106 = scmp.ne.s32.totalorder %s97, %s98
      %p107 = scmp.eq.s32.totalorder %s19, 0
      %p108 = por %p106, %p107
      %p109 = scmp.ne.s32.totalorder %s97, %s98
      %p110 = scmp.eq.s32.totalorder %s20, 3
      %p111 = por %p109, %p110
      %p113 = scmp.ne.s32.totalorder %s98, %s112
      %p114 = scmp.eq.s32.totalorder %s20, 0
      %p115 = por %p113, %p114
      %s117 = sadd.s32 %s116, 1
      %p120 = scmp.eq.s32.totalorder %s14, 3
      %p121 = scmp.ne.s32.totalorder %s116, %s118
      %p122 = scmp.eq.s32.totalorder %s14, 0
      %p123 = por %p121, %p122
      %p124 = scmp.ne.s32.totalorder %s116, %s118
      %p125 = scmp.eq.s32.totalorder %s19, 3
      %p126 = por %p124, %p125
      %p127 = scmp.ne.s32.totalorder %s118, %s119
      %p128 = scmp.eq.s32.totalorder %s19, 0
      %p129 = por %p127, %p128
      %p130 = scmp.ne.s32.totalorder %s118, %s119
      %p131 = scmp.eq.s32.totalorder %s20, 3
      %p132 = por %p130, %p131
      %p134 = scmp.ne.s32.totalorder %s119, %s133
      %p135 = scmp.eq.s32.totalorder %s20, 0
      %p136 = por %p134, %p135
      %p137 = scmp.le.s32.totalorder 1, %s14
      %p138 = scmp.lt.s32.totalorder %s14, 5
      %p139 = pnand %p137, %p138
      %p140 = pneg %p139
      // Predicated region
      $region9: #{tpu_custom_call.1} parent=5 // pred_check
        _
      $region10: #{tpu_custom_call.1} parent=5 // pred_check_branch
        %142 = sbr.rel (%p139) target = $region12
      $region11: #{tpu_custom_call.1} parent=5 // pred_region
        %s143 = ssub.s32 %s14, 1
        // Predicated region
        $region13: #{tpu_custom_call.1} parent=11 // pred_check
          %p144 = pneg %p35
        $region14: #{tpu_custom_call.1} parent=11 // pred_check_branch
          %146 = sbr.rel (%p144) target = $region16
        $region15: #{tpu_custom_call.1} parent=11 // pred_region
          _
        $region16: #{tpu_custom_call.1} parent=11 // pred_fallthru
          _
        // Predicated region
        $region17: #{tpu_custom_call.1} parent=11 // pred_check
          %p147 = pneg %p108
        $region18: #{tpu_custom_call.1} parent=11 // pred_check_branch
          %149 = sbr.rel (%p147) target = $region20
        $region19: #{tpu_custom_call.1} parent=11 // pred_region
          _
        $region20: #{tpu_custom_call.1} parent=11 // pred_fallthru
          _
      $region12: #{tpu_custom_call.1} parent=5 // pred_fallthru
        _
      %p150 = scmp.lt.s32.totalorder %s14, 4
      // Predicated region
      $region21: #{tpu_custom_call.1} parent=5 // pred_check
        %p151 = pneg %p150
      $region22: #{tpu_custom_call.1} parent=5 // pred_check_branch
        %153 = sbr.rel (%p151) target = $region24
      $region23: #{tpu_custom_call.1} parent=5 // pred_region
        // Predicated region
        $region25: #{tpu_custom_call.1} parent=23 // pred_check
          %p154 = pneg %p55
        $region26: #{tpu_custom_call.1} parent=23 // pred_check_branch
          %156 = sbr.rel (%p154) target = $region28
        $region27: #{tpu_custom_call.1} parent=23 // pred_region
          %s157 = sand.u32 %s45, 1
          %s158 = scalar_lea.sflag [#allocation6], %s157
          %s159 = sand.u32 %s45, 1
          %s160 = smul.addr %s159, 64
          %s161 = scalar_lea.vmem [#allocation5], %s160
          %s163 = ssub.s32 1024, 1024
          %164 = vsyncadd %s158, %s163
          %s165 = smul.addr %s14, 64
          %s166 = scalar_lea.hbm %s1, %s165
          %s167 = sshll.u32 %s161, 4
          %s168 = int_to_ptr.vmem [resolvable:$true] %s167
          %173 = dma.hbm_to_vmem [thread:$0]  %s166, 1024, %s168, %s158, 256, 64, 4
        $region28: #{tpu_custom_call.1} parent=23 // pred_fallthru
          _
        // Predicated region
        $region29: #{tpu_custom_call.1} parent=23 // pred_check
          %p174 = pneg %p81
        $region30: #{tpu_custom_call.1} parent=23 // pred_check_branch
          %176 = sbr.rel (%p174) target = $region32
        $region31: #{tpu_custom_call.1} parent=23 // pred_region
          %p177 = scmp.lt.s32.totalorder %s14, 3
          %s178 = scalar_select %p177, %s14, 3
          %s179 = scalar_lea.vmem %s2, %s178
        $region32: #{tpu_custom_call.1} parent=23 // pred_fallthru
          _
      $region24: #{tpu_custom_call.1} parent=5 // pred_fallthru
        _
      %p180 = scmp.le.s32.totalorder 1, %s14
      %p181 = scmp.lt.s32.totalorder %s14, 5
      %p182 = pnand %p180, %p181
      %p183 = pneg %p182
      // Predicated region
      $region33: #{tpu_custom_call.1} parent=5 // pred_check
        _
      $region34: #{tpu_custom_call.1} parent=5 // pred_check_branch
        %185 = sbr.rel (%p182) target = $region36
      $region35: #{tpu_custom_call.1} parent=5 // pred_region
        %s186 = ssub.s32 %s14, 1
        %s187 = sand.u32 %s48, 1
        %s188 = scalar_lea.sflag [#allocation6], %s187
        %s189 = sand.u32 %s48, 1
        %s190 = smul.addr %s189, 64
        %s191 = scalar_lea.vmem [#allocation5], %s190
        // Predicated region
        $region37: #{tpu_custom_call.1} parent=35 // pred_check
          %p192 = pneg %p61
        $region38: #{tpu_custom_call.1} parent=35 // pred_check_branch
          %194 = sbr.rel (%p192) target = $region40
        $region39: #{tpu_custom_call.1} parent=35 // pred_region
          %195 = dma.done %s188, 1024
        $region40: #{tpu_custom_call.1} parent=35 // pred_fallthru
          _
        %p196 = pneg %p35
        %p197 = pneg %p32
        %s198 = sand.u32 %s48, 1
        %s199 = scalar_lea.sflag [#allocation6], %s198
        %s200 = sand.u32 %s48, 1
        %s201 = smul.addr %s200, 64
        %s202 = scalar_lea.vmem [#allocation5], %s201
        %p203 = pneg %p61
        %p204 = pneg %p58
        %p205 = scmp.lt.s32.totalorder %s19, 3
        %s206 = scalar_select %p205, %s19, 3
        %s207 = scalar_lea.vmem %s2, %s206
        %p208 = pneg %p87
        %p209 = pneg %p84
        %p210 = pneg %p108
        %p211 = pneg %p105
        %p212 = pneg %p129
        %p213 = pneg %p126
        %p214 = scmp.lt.s32.totalorder %s19, 3
        %s215 = scalar_select %p214, %s19, 3
        %s216 = scalar_lea.vmem %s2, %s215
        %p218 = scmp.eq.s32.totalorder %s19, 0
        // Predicated region
        $region41: #{tpu_custom_call.1} parent=35 // pred_check
          %p219 = pneg %p218
        $region42: #{tpu_custom_call.1} parent=35 // pred_check_branch
          %221 = sbr.rel (%p219) target = $region44
        $region43: #{tpu_custom_call.1} parent=35 // pred_region
          %vm222 = vcmask 1024
          %223 = vst.msk [vmem:[#allocation2] sm:$0x3] %vm222, -inf
          %224 = vst.msk [vmem:[#allocation3] sm:$0x3] %vm222, 0.0
          %225 = vst.msk [vmem:[#allocation4] sm:$0x3] %vm222, 0.0
        $region44: #{tpu_custom_call.1} parent=35 // pred_fallthru
          _
        %v226 = vld [vmem:[%s0] sm:$0x1]
        %v227 = vld [vmem:[%s191] sm:$0xf]
        %v228 = vld [vmem:[%s191 + $0x4] sm:$0xf]
        %v229 = vld [vmem:[%s191 + $0x8] sm:$0xf]
        %v230 = vld [vmem:[%s191 + $0xc] sm:$0xf]
        %v231 = vld [vmem:[%s191 + $0x10] sm:$0xf]
        %v232 = vld [vmem:[%s191 + $0x14] sm:$0xf]
        %v233 = vld [vmem:[%s191 + $0x18] sm:$0xf]
        %v234 = vld [vmem:[%s191 + $0x1c] sm:$0xf]
        %v235 = vld [vmem:[%s191 + $0x20] sm:$0xf]
        %v236 = vld [vmem:[%s191 + $0x24] sm:$0xf]
        %v237 = vld [vmem:[%s191 + $0x28] sm:$0xf]
        %v238 = vld [vmem:[%s191 + $0x2c] sm:$0xf]
        %v239 = vld [vmem:[%s191 + $0x30] sm:$0xf]
        %v240 = vld [vmem:[%s191 + $0x34] sm:$0xf]
        %v241 = vld [vmem:[%s191 + $0x38] sm:$0xf]
        %v242 = vld [vmem:[%s191 + $0x3c] sm:$0xf]
        %v243 = vld [vmem:[%s216] sm:$0x1]
        %v245 = vlaneseq
        %v246 = vshrl.u32 %v245, 7
        %v247 = vsub.s32 0, %v246
        %v248 = vrot.slane %v243, %v247
        %v266 = vunpack.c.l.b16 %v227
        %v267 = vunpack.c.l.b16 %v228
        %v268 = vunpack.c.l.b16 %v229
        %v269 = vunpack.c.l.b16 %v230
        %v270 = vunpack.c.l.b16 %v231
        %v271 = vunpack.c.l.b16 %v232
        %v272 = vunpack.c.l.b16 %v233
        %v273 = vunpack.c.l.b16 %v234
        %v274 = vunpack.c.l.b16 %v235
        %v275 = vunpack.c.l.b16 %v236
        %v276 = vunpack.c.l.b16 %v237
        %v277 = vunpack.c.l.b16 %v238
        %v278 = vunpack.c.l.b16 %v239
        %v279 = vunpack.c.l.b16 %v240
        %v280 = vunpack.c.l.b16 %v241
        %v281 = vunpack.c.l.b16 %v242
        %v282 = vpack.c.b16 %v267, %v266
        %v283 = vpack.c.b16 %v269, %v268
        %v284 = vpack.c.b16 %v271, %v270
        %v285 = vpack.c.b16 %v273, %v272
        %v286 = vpack.c.b16 %v275, %v274
        %v287 = vpack.c.b16 %v277, %v276
        %v288 = vpack.c.b16 %v279, %v278
        %v289 = vpack.c.b16 %v281, %v280
        %298 = vmatprep.subr.bf16.mxu0 0
        %299 = vmatpush1.bf16.msra.mxu0 %v282
        %300 = vmatprep.subr.bf16.mxu0 0
        %301 = vmatpush1.bf16.msra.mxu0 %v283
        %302 = vmatprep.subr.bf16.mxu0 0
        %303 = vmatpush1.bf16.msra.mxu0 %v284
        %304 = vmatprep.subr.bf16.mxu0 0
        %305 = vmatpush1.bf16.msra.mxu0 %v285
        %306 = vmatprep.subr.bf16.mxu0 0
        %307 = vmatpush1.bf16.msra.mxu0 %v286
        %308 = vmatprep.subr.bf16.mxu0 0
        %309 = vmatpush1.bf16.msra.mxu0 %v287
        %310 = vmatprep.subr.bf16.mxu0 0
        %311 = vmatpush1.bf16.msra.mxu0 %v288
        %312 = vmatprep.subr.bf16.mxu0 0
        %313 = vmatpush1.bf16.msra.mxu0 %v289
        %314 = vmatprep.subr.bf16.mxu0 0
        %315 = vmatpush1.bf16.msra.mxu0 0
        %316 = vmatprep.subr.bf16.mxu0 0
        %317 = vmatpush1.bf16.msra.mxu0 0
        %318 = vmatprep.subr.bf16.mxu0 0
        %319 = vmatpush1.bf16.msra.mxu0 0
        %320 = vmatprep.subr.bf16.mxu0 0
        %321 = vmatpush1.bf16.msra.mxu0 0
        %322 = vmatprep.subr.bf16.mxu0 0
        %323 = vmatpush1.bf16.msra.mxu0 0
        %324 = vmatprep.subr.bf16.mxu0 0
        %325 = vmatpush1.bf16.msra.mxu0 0
        %326 = vmatprep.subr.bf16.mxu0 0
        %327 = vmatpush1.bf16.msra.mxu0 0
        %328 = vmatprep.subr.bf16.mxu0 0
        %329 = vmatpush1.bf16.msra.mxu0 0
        %330 = vmatprep.mubr.bf16.mxu0 0
        %331 = vmatmul.mubr.bf16.gmra.mrb[0].mxu0 %v226
        %v332 = vpop.f32.mrb[0].mxu0
        %v333 = vadd.f32 %v248, %v332
        %v334 = vpop.f32.mrb[0].mxu0
        %v335 = vpop.f32.mrb[0].mxu0
        %v336 = vpop.f32.mrb[0].mxu0
        %337 = vdwg.mxu0
        %v338 = vld [vmem:[#allocation2] sm:$0x3]
        %vm339 = vcmask 1041408
        %v340 = vsel %vm339, %v333, -inf
        %341 = vmax.xlane.f32.xlu0 %v340
        %v342 = vpop.xlane.xlu0 %341
        %v343 = vmax.f32 %v338, %v342
        %v344 = vsub.f32 %v338, %v343
        %v345 = vmul.f32 %v344, 1.442695
        %v346 = vpow.pop %v345
        %v347 = vld [vmem:[#allocation3] sm:$0x3]
        %v348 = vmul.f32 %v346, %v347
        %350 = vset.pattern.permute.xlu0 0
        %351 = vperm.xlu0 %350, %v343
        %v352 = vpop.permute.xlu0 %351
        %v354 = vsub.f32 %v333, %v352
        %v355 = vmul.f32 %v354, 1.442695
        %v356 = vpow.pop %v355
        %v357 = vsel %vm339, %v356, 0.0
        %358 = vadd.xlane.f32.xlu0 %v357
        %v359 = vpop.xlane.xlu0 %358
        %v360 = vadd.f32 %v348, %v359
        %vm361 = vcmask 1024
        %362 = vst.msk [vmem:[#allocation3] sm:$0x3] %vm361, %v360
        %363 = vst.msk [vmem:[#allocation2] sm:$0x3] %vm361, %v343
        %v364 = vlaneseq
        %v365 = vand.u32 %v364, 127
        %s366 = smul.u32 %s19, 128
        %v367 = vstv %s366
        %v368 = vadd.s32 %v365, %v367
        %v369 = vld [vmem:[%s3] sm:$0x3]
        %370 = vset.pattern.permute.xlu0 0
        %371 = vperm.xlu0 %370, %v369
        %v372 = vpop.permute.xlu0 %371
        %vm373 = vcmp.eq.s32.totalorder %v368, %v372
        %v374 = vld [vmem:[#allocation4] sm:$0x3]
        %v375 = vsel %vm373, %v333, 0.0
        %v376 = vsel %vm339, %v375, 0.0
        %377 = vadd.xlane.f32.xlu0 %v376
        %v378 = vpop.xlane.xlu0 %377
        %v379 = vadd.f32 %v374, %v378
        %380 = vst.msk [vmem:[#allocation4] sm:$0x3] %vm361, %v379
        %p381 = scmp.eq.s32.totalorder %s19, 3
        // Predicated region
        $region45: #{tpu_custom_call.1} parent=35 // pred_check
          %p382 = pneg %p381
        $region46: #{tpu_custom_call.1} parent=35 // pred_check_branch
          %384 = sbr.rel (%p382) target = $region48
        $region47: #{tpu_custom_call.1} parent=35 // pred_region
          %v385 = vld [vmem:[#allocation2] sm:$0x3]
          %v386 = vld [vmem:[#allocation3] sm:$0x3]
          %v387 = vlog2.pop %v386
          %v388 = vmul.f32 %v387, 0.6931472
          %v389 = vadd.f32 %v385, %v388
          %v390 = vld [vmem:[#allocation4] sm:$0x3]
          %v391 = vsub.f32 %v389, %v390
          %v392 = vsel %vm361, %v391, 0.0
          %393 = vadd.xlane.f32.xlu0 %v392
          %v394 = vpop.xlane.xlu0 %393
          %v395 = vrot.slane %v394, 4
          %v396 = vadd.f32 %v394, %v395
          %v397 = vrot.slane %v396, 2
          %v398 = vadd.f32 %v396, %v397
          %v399 = vrot.slane %v398, 1
          %v400 = vadd.f32 %v398, %v399
          %s401 = vtos %v400
          %v402 = vrcp.pop 2.0
          %s403 = vtos %v402
          %s404 = smul.f32 %s401, %s403
          %s405 = scalar_lea.smem [#allocation8], 0
          %406 = sst [smem:[%s405]] %s404
        $region48: #{tpu_custom_call.1} parent=35 // pred_fallthru
          _
        // Predicated region
        $region49: #{tpu_custom_call.1} parent=35 // pred_check
          %p407 = pneg %p126
        $region50: #{tpu_custom_call.1} parent=35 // pred_check_branch
          %409 = sbr.rel (%p407) target = $region52
        $region51: #{tpu_custom_call.1} parent=35 // pred_region
          %s411 = ssub.s32 16, 16
          %412 = vsyncadd [#allocation7], %s411
          %415 = dma.smem_to_hbm [#allocation8], 16, %s4, [#allocation7]
        $region52: #{tpu_custom_call.1} parent=35 // pred_fallthru
          _
        // Predicated region
        $region53: #{tpu_custom_call.1} parent=35 // pred_check
          %p416 = pneg %p126
        $region54: #{tpu_custom_call.1} parent=35 // pred_check_branch
          %418 = sbr.rel (%p416) target = $region56
        $region55: #{tpu_custom_call.1} parent=35 // pred_region
          %419 = dma.done [#allocation7], 16
        $region56: #{tpu_custom_call.1} parent=35 // pred_fallthru
          _
        %420 = sfence
      $region36: #{tpu_custom_call.1} parent=5 // pred_fallthru
        _
      %p421 = scmp.le.s32.totalorder 2, %s14
      // Predicated region
      $region57: #{tpu_custom_call.1} parent=5 // pred_check
        %p422 = pneg %p421
      $region58: #{tpu_custom_call.1} parent=5 // pred_check_branch
        %424 = sbr.rel (%p422) target = $region60
      $region59: #{tpu_custom_call.1} parent=5 // pred_region
        %s425 = ssub.s32 %s14, 2
      $region60: #{tpu_custom_call.1} parent=5 // pred_fallthru
        _
    $region6: #{tpu_custom_call.1} parent=1 // loop_footer
      %s18 = sadd.s32 1, %s14
    $region7: #{tpu_custom_call.1} parent=1 // loop_footer_branch
      %13 = sbr.rel target = $region3
    $region8: #{tpu_custom_call.1} parent=1 // loop_exit
      _
    %426 = vsyncpa [#allocation6], 1
    %s427 = scalar_lea.sflag [#allocation6], 1
    %428 = vsyncpa %s427, 1
    %429 = vsyncpa [#allocation7], 1
    %s430 = scalar_lea.sflag [#allocation7], 1
    %431 = vsyncpa %s430, 1

</llo_original>
